<compile_context>
chip_gen: v7x
topology: tpu7x:2x2x1
jax: 0.10.0
libtpu: 0.0.40
codegen_flags: <defaults>
</compile_context>

<pallas_src>
import math

import jax
import jax.numpy as jnp
from jax.experimental import pallas as pl
from jax.experimental.pallas import tpu as pltpu

_LANES = 128


def _cdiv(a: int, b: int) -> int:
    return -(-a // b)


def _round_up(a: int, b: int) -> int:
    return _cdiv(a, b) * b


def _chip_kind() -> str:
    try:
        return jax.devices()[0].device_kind.lower()
    except Exception:  # defensive: never let detection break the kernel
        return ""


def _default_tile_rows() -> int:
    # v5e: 16 MiB default scoped VMEM + slowest HBM -> 2048 rows (8 MiB
    # double-buffered f32).  v6e / v7x: 4096 rows = 16 MiB double-buffered,
    # safely under the 32 MiB scoped limit requested below.
    return 2048 if "v5" in _chip_kind() else 4096


def _dim_semantics():
    # Only CORE_PARALLEL actually shards a grid axis across v7x's two
    # TensorCores; plain "parallel" vs "arbitrary" does not change codegen.
    if "v7" in _chip_kind() and hasattr(pltpu, "CORE_PARALLEL"):
        return ("arbitrary", pltpu.CORE_PARALLEL)
    return ("parallel", "parallel")


def _gray_to_rgb_kernel(g_ref, out_ref):
    # g_ref: (TR, 128); out_ref: (3, TR, 128) -- three dense full-vreg stores.
    g = g_ref[...]
    out_ref[0] = g
    out_ref[1] = g
    out_ref[2] = g


def all2rgb(img: jax.Array, *, tile_rows: int | None = None) -> jax.Array:
    """Convert a (..., C, H, W) image to RGB. If C == 1, repeat the channel 3x."""
    assert img.ndim >= 3, "expected (..., C, H, W) image"
    c, h, w = img.shape[-3:]
    if c != 1:
        # Already multi-channel: semantic no-op, return input (no copy kernel).
        return img

    batch_shape = img.shape[:-3]
    b = math.prod(batch_shape)  # == 1 for a plain (1, H, W) image
    n = h * w
    r = _cdiv(n, _LANES)
    npad = r * _LANES

    # Lane-dense layout: flatten the spatial dims (padding the tail so the
    # lane axis is a dense 128) and view each gray plane as (R, 128).
    flat = img.reshape(b, n)
    if npad != n:
        flat = jnp.pad(flat, ((0, 0), (0, npad - n)))
    flat = flat.reshape(b, r, _LANES)

    max_rows = tile_rows if tile_rows is not None else _default_tile_rows()
    if r <= max_rows:
        tr = r                      # full-extent block: always layout-legal
    else:
        # Even out the blocks (no tiny ragged last tile) and keep the sublane
        # dim a multiple of 8 to satisfy the (8, 128) tiling constraint.
        tr = _round_up(_cdiv(r, _cdiv(r, max_rows)), 8)
    num_tiles = _cdiv(r, tr)

    itemsize = img.dtype.itemsize
    cost = pl.CostEstimate(
        flops=0,
        transcendentals=0,
        bytes_accessed=4 * b * npad * itemsize,  # 1 read + 3 writes
    )

    out = pl.pallas_call(
        _gray_to_rgb_kernel,
        out_shape=jax.ShapeDtypeStruct((b, 3, r, _LANES), img.dtype),
        grid=(b, num_tiles),
        in_specs=[pl.BlockSpec((None, tr, _LANES), lambda bi, i: (bi, i, 0))],
        out_specs=pl.BlockSpec((None, 3, tr, _LANES), lambda bi, i: (bi, 0, i, 0)),
        compiler_params=pltpu.CompilerParams(
            dimension_semantics=_dim_semantics(),
            vmem_limit_bytes=32 * 1024 * 1024,
        ),
        cost_estimate=cost,
    )(flat)

    out = out.reshape(b, 3, npad)
    if npad != n:
        out = out[:, :, :n]
    return out.reshape(*batch_shape, 3, h, w)


if __name__ == "__main__":
    key = jax.random.PRNGKey(0)
    k1, k2, k3, k4, k5 = jax.random.split(key, 5)

    # Grayscale, lane-dense path: (1, 16, 16) -> (3, 16, 16).
    gray = jax.random.normal(k1, (1, 16, 16), dtype=jnp.float32)
    out = jax.block_until_ready(all2rgb(gray))
    assert out.shape == (3, 16, 16)
    assert jnp.array_equal(out, jnp.broadcast_to(gray, (3, 16, 16)))

    # Grayscale with ragged H*W (not a multiple of 128): (1, 24, 20).
    gray_ragged = jax.random.normal(k2, (1, 24, 20), dtype=jnp.float32)
    out = jax.block_until_ready(all2rgb(gray_ragged))
    assert out.shape == (3, 24, 20)
    assert jnp.array_equal(out, jnp.broadcast_to(gray_ragged, (3, 24, 20)))

    # Batched grayscale folded into the grid: (2, 1, 16, 16) -> (2, 3, 16, 16).
    gray_batched = jax.random.normal(k3, (2, 1, 16, 16), dtype=jnp.float32)
    out = jax.block_until_ready(all2rgb(gray_batched))
    assert out.shape == (2, 3, 16, 16)
    assert jnp.array_equal(out, jnp.broadcast_to(gray_batched, (2, 3, 16, 16)))

    # Multi-tile grid coverage (forced small tile): (1, 64, 128), r=64, tr=16.
    gray_big = jax.random.normal(k4, (1, 64, 128), dtype=jnp.bfloat16)
    out = jax.block_until_ready(all2rgb(gray_big, tile_rows=16))
    assert out.shape == (3, 64, 128)
    assert jnp.array_equal(out, jnp.broadcast_to(gray_big, (3, 64, 128)))

    # Already-RGB image: passthrough with no data movement.
    rgb = jax.random.normal(k5, (3, 16, 16), dtype=jnp.float32)
    out = jax.block_until_ready(all2rgb(rgb))
    assert out.shape == (3, 16, 16)
    assert jnp.array_equal(out, rgb)

    print("KERNEL_OK")
</pallas_src>

<mosaic_0001>
module attributes {stable_mosaic.version = 11 : i64} {
  func.func @_gray_to_rgb_kernel(%arg0: i32, %arg1: i32, %arg2: memref<1x2x128xf32, #tpu.memory_space<vmem>>, %arg3: memref<1x3x2x128xf32, #tpu.memory_space<vmem>>) attributes {dimension_semantics = [#tpu.dimension_semantics<parallel>, #tpu.dimension_semantics<parallel>], iteration_bounds = array<i64: 1, 1>, scalar_prefetch = 0 : i64, scratch_operands = 0 : i64, tpu.core_type = #tpu.core_type<tc>, window_params = [{transform_indices = @transform_0, window_bounds = array<i64: 1, 2, 128>}, {transform_indices = @transform_1, window_bounds = array<i64: 1, 3, 2, 128>}]} {
    %c0 = arith.constant 0 : index
    %c0_0 = arith.constant 0 : index
    %c0_1 = arith.constant 0 : index
    %0 = vector.load %arg2[%c0, %c0_0, %c0_1] : memref<1x2x128xf32, #tpu.memory_space<vmem>>, vector<1x2x128xf32>
    %1 = vector.shape_cast %0 : vector<1x2x128xf32> to vector<2x128xf32>
    %c0_2 = arith.constant 0 : index
    %c0_3 = arith.constant 0 : index
    %c0_4 = arith.constant 0 : index
    %c0_5 = arith.constant 0 : index
    %2 = vector.load %arg3[%c0_2, %c0_3, %c0_4, %c0_5] : memref<1x3x2x128xf32, #tpu.memory_space<vmem>>, vector<1x1x2x128xf32>
    %3 = vector.shape_cast %2 : vector<1x1x2x128xf32> to vector<2x128xf32>
    %4 = vector.shape_cast %1 : vector<2x128xf32> to vector<1x1x2x128xf32>
    tpu.vector_store %arg3[%c0_2, %c0_3, %c0_4, %c0_5], %4 {strides = array<i32>} : memref<1x3x2x128xf32, #tpu.memory_space<vmem>>, vector<1x1x2x128xf32>,
    %c0_6 = arith.constant 0 : index
    %c1 = arith.constant 1 : index
    %c0_7 = arith.constant 0 : index
    %c0_8 = arith.constant 0 : index
    %5 = vector.load %arg3[%c0_6, %c1, %c0_7, %c0_8] : memref<1x3x2x128xf32, #tpu.memory_space<vmem>>, vector<1x1x2x128xf32>
    %6 = vector.shape_cast %5 : vector<1x1x2x128xf32> to vector<2x128xf32>
    %7 = vector.shape_cast %1 : vector<2x128xf32> to vector<1x1x2x128xf32>
    tpu.vector_store %arg3[%c0_6, %c1, %c0_7, %c0_8], %7 {strides = array<i32>} : memref<1x3x2x128xf32, #tpu.memory_space<vmem>>, vector<1x1x2x128xf32>,
    %c0_9 = arith.constant 0 : index
    %c2 = arith.constant 2 : index
    %c0_10 = arith.constant 0 : index
    %c0_11 = arith.constant 0 : index
    %8 = vector.load %arg3[%c0_9, %c2, %c0_10, %c0_11] : memref<1x3x2x128xf32, #tpu.memory_space<vmem>>, vector<1x1x2x128xf32>
    %9 = vector.shape_cast %8 : vector<1x1x2x128xf32> to vector<2x128xf32>
    %10 = vector.shape_cast %1 : vector<2x128xf32> to vector<1x1x2x128xf32>
    tpu.vector_store %arg3[%c0_9, %c2, %c0_10, %c0_11], %10 {strides = array<i32>} : memref<1x3x2x128xf32, #tpu.memory_space<vmem>>, vector<1x1x2x128xf32>,
    return
  }
  func.func @transform_0(%arg0: i32, %arg1: i32) -> (i32, i32, i32) {
    %c0_i32 = arith.constant 0 : i32
    %c0_i32_0 = arith.constant 0 : i32
    return %arg0, %arg1, %c0_i32 : i32, i32, i32
  }
  func.func @transform_1(%arg0: i32, %arg1: i32) -> (i32, i32, i32, i32) {
    %c0_i32 = arith.constant 0 : i32
    %c0_i32_0 = arith.constant 0 : i32
    %c0_i32_1 = arith.constant 0 : i32
    return %arg0, %c0_i32, %arg1, %c0_i32_0 : i32, i32, i32, i32
  }
}

</mosaic_0001>

<llo_original>
// kernel: tpu_custom_call.1
$region0: #{tpu_custom_call.1}
  #allocation0 [shape = 'u32[]', space=smem, size = 0x4, offset = 0x4, fixed_abs, tag = 'smem constant byte address 0x4 - core index']
  #allocation1 [shape = 'u32[144,128]{1,0:T(1,128)}', space=vmem, size = 0x12000, scoped, tag = 'internal scratch']
  %s0 = inlined_call_operand.hbm [shape: f32[1,2,128], index: 0, kind: input, shape index: {}]
  %s1 = inlined_call_operand.hbm [shape: f32[1,3,2,128], index: 1, kind: output, shape index: {}]
  %s2 = sld [smem:[#allocation0]]
  $region18: #{tpu_custom_call.1} parent=0
    _
  %s4 = ssub.s32 1, %s2
  %s5 = scalar_select 0, %s4, %s2
  $region1: #{tpu_custom_call.1} parent=0
    #allocation2 [shape = 'u8[1024]{0}', space=vmem, size = 0x400, scoped, tag = 'input window, operand 0, single buffered']
    #allocation3 [shape = 's32[1]{0}', space=sflag, size = 0x4, scoped, tag = 'scoped memory for tpu_custom_call.1']
    #allocation4 [shape = 's32[1]{0}', space=sflag, size = 0x4, scoped, tag = 'scoped memory for tpu_custom_call.1']
    #allocation5 [shape = 'u8[3072]{0}', space=vmem, size = 0xc00, scoped, tag = 'output window, operand 0, single buffered']
    %6 = vsyncpa [#allocation3], 0
    %7 = vsyncpa [#allocation4], 0
    // Predicated region
    $region2: #{tpu_custom_call.1} parent=1 // pred_check
      _
    $region3: #{tpu_custom_call.1} parent=1 // pred_check_branch
      %9 = sbr.rel (0) target = $region5
    $region4: #{tpu_custom_call.1} parent=1 // pred_region
      %s11 = ssub.s32 32, 32
      %12 = vsyncadd [#allocation3], %s11
      %s14 = sshll.u32 [#allocation2], 4
      %s15 = int_to_ptr.vmem [resolvable:$true] %s14
      %17 = dma.hbm_to_vmem [thread:$0]  %s0, 32, %s15, [#allocation3]
    $region5: #{tpu_custom_call.1} parent=1 // pred_fallthru
      _
    // Predicated region
    $region6: #{tpu_custom_call.1} parent=1 // pred_check
      _
    $region7: #{tpu_custom_call.1} parent=1 // pred_check_branch
      %19 = sbr.rel (0) target = $region9
    $region8: #{tpu_custom_call.1} parent=1 // pred_region
      %20 = dma.done [#allocation3], 32
    $region9: #{tpu_custom_call.1} parent=1 // pred_fallthru
      _
    %v21 = vld [vmem:[#allocation2] sm:$0x3]
    %22 = vst [vmem:[#allocation5] sm:$0x3] %v21
    %s23 = scalar_lea.vmem [#allocation5], 2
    %24 = vst [vmem:[%s23] sm:$0x3] %v21
    %s25 = scalar_lea.vmem [#allocation5], 4
    %26 = vst [vmem:[%s25] sm:$0x3] %v21
    // Predicated region
    $region10: #{tpu_custom_call.1} parent=1 // pred_check
      _
    $region11: #{tpu_custom_call.1} parent=1 // pred_check_branch
      %28 = sbr.rel (0) target = $region13
    $region12: #{tpu_custom_call.1} parent=1 // pred_region
      %s30 = ssub.s32 96, 96
      %31 = vsyncadd [#allocation4], %s30
      %s32 = sshll.u32 [#allocation5], 4
      %s33 = int_to_ptr.vmem [resolvable:$true] %s32
      %38 = dma.vmem_to_hbm [thread:$0]  %s33, 96, %s1, [#allocation4], 32, 32, 2
    $region13: #{tpu_custom_call.1} parent=1 // pred_fallthru
      _
    // Predicated region
    $region14: #{tpu_custom_call.1} parent=1 // pred_check
      _
    $region15: #{tpu_custom_call.1} parent=1 // pred_check_branch
      %40 = sbr.rel (0) target = $region17
    $region16: #{tpu_custom_call.1} parent=1 // pred_region
      %41 = dma.done [#allocation4], 96
    $region17: #{tpu_custom_call.1} parent=1 // pred_fallthru
      _
    %42 = vsyncpa [#allocation3], 1
    %43 = vsyncpa [#allocation4], 1

</llo_original>
